<compile_context>
chip_gen: v6e
topology: v6e:2x2x1
jax: 0.10.0
libtpu: 0.0.40
codegen_flags: <defaults>
</compile_context>

<pallas_src>
import math
from functools import partial

import jax
import jax.numpy as jnp
from jax.experimental import pallas as pl
from jax.experimental.pallas import tpu as pltpu


def _round_up(x, m):
    return ((x + m - 1) // m) * m


# ---------------------------------------------------------------------------
# Tiled linear (matmul + bias) kernel
# ---------------------------------------------------------------------------

def _linear_kernel(x_ref, w_ref, b_ref, o_ref, acc_ref):
    @pl.when(pl.program_id(2) == 0)
    def _init():
        acc_ref[...] = jnp.zeros_like(acc_ref)

    acc_ref[...] += jnp.dot(x_ref[...], w_ref[...],
                            preferred_element_type=jnp.float32)

    @pl.when(pl.program_id(2) == pl.num_programs(2) - 1)
    def _finalize():
        o_ref[...] = (acc_ref[...] + b_ref[...]).astype(o_ref.dtype)


def pallas_linear(x, w, b, *, out_dtype=jnp.float32, tm=256, tn=256, tk=512):
    """y = x @ w + b with a tiled, pipelined Pallas matmul (bf16 MXU, f32 acc)."""
    m, k = x.shape
    n = w.shape[1]

    tm = min(tm, _round_up(m, 8))
    tk = min(tk, _round_up(k, 128))
    tn = min(tn, _round_up(n, 128))
    mp, kp, np_ = _round_up(m, tm), _round_up(k, tk), _round_up(n, tn)

    xb = x.astype(jnp.bfloat16)
    wb = w.astype(jnp.bfloat16)
    if (mp, kp) != (m, k):
        xb = jnp.pad(xb, ((0, mp - m), (0, kp - k)))
    if (kp, np_) != (k, n):
        wb = jnp.pad(wb, ((0, kp - k), (0, np_ - n)))
    b2 = b.astype(jnp.float32).reshape(1, -1)
    if np_ != n:
        b2 = jnp.pad(b2, ((0, 0), (0, np_ - n)))

    out = pl.pallas_call(
        _linear_kernel,
        out_shape=jax.ShapeDtypeStruct((mp, np_), out_dtype),
        grid=(mp // tm, np_ // tn, kp // tk),
        in_specs=[
            pl.BlockSpec((tm, tk), lambda i, j, kk: (i, kk)),
            pl.BlockSpec((tk, tn), lambda i, j, kk: (kk, j)),
            pl.BlockSpec((1, tn), lambda i, j, kk: (0, j)),
        ],
        out_specs=pl.BlockSpec((tm, tn), lambda i, j, kk: (i, j)),
        scratch_shapes=[pltpu.VMEM((tm, tn), jnp.float32)],
        compiler_params=pltpu.CompilerParams(
            dimension_semantics=("parallel", "parallel", "arbitrary")),
    )(xb, wb, b2)

    if (mp, np_) != (m, n):
        out = out[:m, :n]
    return out


# ---------------------------------------------------------------------------
# Attention kernel: all heads of one batch element per grid step,
# lane-dense merged-head output.
# ---------------------------------------------------------------------------

def _mha_attn_kernel(*refs, n_heads, head_dim, inv_scale, masked):
    if masked:
        q_ref, k_ref, v_ref, m_ref, o_ref = refs
    else:
        q_ref, k_ref, v_ref, o_ref = refs

    q_all = q_ref[0] * inv_scale      # [Lq, hid] bf16, scale folded into Q
    k_all = k_ref[0]                  # [Lk, hid] bf16
    v_all = v_ref[0]                  # [Lk, hid] bf16

    if masked:
        drop = (m_ref[0] == 0)        # [Lq, Lk] bool, shared by all heads

    outs = []
    # Static unroll over heads: per-head [Lq,Dh]x[Lk,Dh]^T MXU matmuls,
    # softmax in f32, heads re-merged into one lane-dense [Lq, hid] store.
    for h in range(n_heads):
        lo = h * head_dim
        hi = lo + head_dim
        qh = q_all[:, lo:hi]
        kh = k_all[:, lo:hi]
        vh = v_all[:, lo:hi]

        energy = jax.lax.dot_general(
            qh, kh, (((1,), (1,)), ((), ())),
            preferred_element_type=jnp.float32)          # [Lq, Lk] f32
        if masked:
            energy = jnp.where(drop, jnp.float32(-1e10), energy)

        e = energy - jnp.max(energy, axis=-1, keepdims=True)
        p = jnp.exp(e)
        attn = p * pl.reciprocal(jnp.sum(p, axis=-1, keepdims=True), approx=True)

        outs.append(jnp.dot(attn.astype(vh.dtype), vh,
                            preferred_element_type=jnp.float32))

    o_ref[0] = jnp.concatenate(outs, axis=-1).astype(o_ref.dtype)


def pallas_attention(q, k, v, mask3, *, n_heads, head_dim):
    """q: [B,Lq,hid] bf16, k/v: [B,Lk,hid] bf16, mask3: int8 [B,Lq,Lk] or None."""
    b, lq, hid = q.shape
    lk = k.shape[1]
    masked = mask3 is not None
    kernel = partial(_mha_attn_kernel, n_heads=n_heads, head_dim=head_dim,
                     inv_scale=1.0 / math.sqrt(float(head_dim)), masked=masked)

    in_specs = [
        pl.BlockSpec((1, lq, hid), lambda i: (i, 0, 0)),
        pl.BlockSpec((1, lk, hid), lambda i: (i, 0, 0)),
        pl.BlockSpec((1, lk, hid), lambda i: (i, 0, 0)),
    ]
    args = [q, k, v]
    if masked:
        in_specs.append(pl.BlockSpec((1, lq, lk), lambda i: (i, 0, 0)))
        args.append(mask3)

    # TODO(synk): for long sequences convert this to a flash-style online
    # softmax with a kv grid axis instead of holding [Lq, Lk] per head in VMEM.
    return pl.pallas_call(
        kernel,
        out_shape=jax.ShapeDtypeStruct((b, lq, hid), jnp.bfloat16),
        grid=(b,),
        in_specs=in_specs,
        out_specs=pl.BlockSpec((1, lq, hid), lambda i: (i, 0, 0)),
        compiler_params=pltpu.CompilerParams(
            dimension_semantics=("parallel",)),
    )(*args)


# ---------------------------------------------------------------------------
# Module wrapper
# ---------------------------------------------------------------------------

def init_params(key, hid_dim):
    ks = jax.random.split(key, 8)
    bound = 1.0 / math.sqrt(hid_dim)

    def lin(kw, kb):
        w = jax.random.uniform(kw, (hid_dim, hid_dim), jnp.float32, -bound, bound)
        b = jax.random.uniform(kb, (hid_dim,), jnp.float32, -bound, bound)
        return w, b

    wq, bq = lin(ks[0], ks[1])
    wk, bk = lin(ks[2], ks[3])
    wv, bv = lin(ks[4], ks[5])
    wo, bo = lin(ks[6], ks[7])
    return dict(wq=wq, bq=bq, wk=wk, bk=bk, wv=wv, bv=bv, wo=wo, bo=bo)


def mha_forward(params, query, key, value, mask=None, *, n_heads):
    bsz, lq, hid = query.shape
    lk = key.shape[1]
    head_dim = hid // n_heads

    q2 = query.reshape(-1, hid)
    k2 = key.reshape(-1, hid)
    v2 = value.reshape(-1, hid)

    # --- Q/K/V projections (fused whenever the inputs alias) -----------------
    if (query is key) and (key is value):
        w_qkv = jnp.concatenate([params["wq"], params["wk"], params["wv"]], axis=1)
        b_qkv = jnp.concatenate([params["bq"], params["bk"], params["bv"]])
        qkv = pallas_linear(q2, w_qkv, b_qkv, out_dtype=jnp.bfloat16)
        q = qkv[:, :hid].reshape(bsz, lq, hid)
        k = qkv[:, hid:2 * hid].reshape(bsz, lk, hid)
        v = qkv[:, 2 * hid:].reshape(bsz, lk, hid)
    elif key is value:
        q = pallas_linear(q2, params["wq"], params["bq"],
                          out_dtype=jnp.bfloat16).reshape(bsz, lq, hid)
        w_kv = jnp.concatenate([params["wk"], params["wv"]], axis=1)
        b_kv = jnp.concatenate([params["bk"], params["bv"]])
        kv = pallas_linear(k2, w_kv, b_kv, out_dtype=jnp.bfloat16)
        k = kv[:, :hid].reshape(bsz, lk, hid)
        v = kv[:, hid:].reshape(bsz, lk, hid)
    else:
        q = pallas_linear(q2, params["wq"], params["bq"],
                          out_dtype=jnp.bfloat16).reshape(bsz, lq, hid)
        k = pallas_linear(k2, params["wk"], params["bk"],
                          out_dtype=jnp.bfloat16).reshape(bsz, lk, hid)
        v = pallas_linear(v2, params["wv"], params["bv"],
                          out_dtype=jnp.bfloat16).reshape(bsz, lk, hid)

    # --- compact int8 mask [B, Lq, Lk] (mask assumed identical across heads) --
    mask3 = None
    if mask is not None:
        m = jnp.broadcast_to(jnp.asarray(mask), (bsz, 1, lq, lk))[:, 0]
        mask3 = m.astype(jnp.int8)

    # --- attention, heads merged in-kernel (lane-dense [B, Lq, hid] output) ---
    ctx = pallas_attention(q, k, v, mask3, n_heads=n_heads, head_dim=head_dim)

    # --- output projection ----------------------------------------------------
    out = pallas_linear(ctx.reshape(-1, hid), params["wo"], params["bo"],
                        out_dtype=jnp.float32)
    # TODO(synk): training-mode dropout on attention probabilities not implemented.
    return out.reshape(bsz, lq, hid)


# Plain-JAX f32 reference for sanity checking.
def mha_reference(params, query, key, value, mask=None, *, n_heads):
    bsz, lq, hid = query.shape
    head_dim = hid // n_heads
    q = query @ params["wq"] + params["bq"]
    k = key @ params["wk"] + params["bk"]
    v = value @ params["wv"] + params["bv"]
    qh = q.reshape(bsz, lq, n_heads, head_dim).transpose(0, 2, 1, 3)
    kh = k.reshape(bsz, -1, n_heads, head_dim).transpose(0, 2, 1, 3)
    vh = v.reshape(bsz, -1, n_heads, head_dim).transpose(0, 2, 1, 3)
    energy = jnp.einsum("bhqd,bhkd->bhqk", qh, kh) / math.sqrt(head_dim)
    if mask is not None:
        energy = jnp.where(mask == 0, -1e10, energy)
    attn = jax.nn.softmax(energy, axis=-1)
    x = jnp.einsum("bhqk,bhkd->bhqd", attn, vh)
    x = x.transpose(0, 2, 1, 3).reshape(bsz, lq, hid)
    return x @ params["wo"] + params["bo"]


if __name__ == "__main__":
    B, L, HID, N_HEADS = 2, 8, 32, 4

    root = jax.random.PRNGKey(0)
    kp, kx, kq, kkv, km = jax.random.split(root, 5)

    params = init_params(kp, HID)
    # Quantize params/inputs to bf16-representable values so the bf16-operand
    # Pallas path and the f32 reference differ only by intermediate rounding.
    params = {n: p.astype(jnp.bfloat16).astype(jnp.float32)
              for n, p in params.items()}

    # --- check 1: self-attention with a key-padding mask (fused QKV path) ----
    x = jax.random.normal(kx, (B, L, HID), jnp.float32)
    x = x.astype(jnp.bfloat16).astype(jnp.float32)
    mask = (jax.random.uniform(km, (B, 1, 1, L)) > 0.2).astype(jnp.int32)

    out = mha_forward(params, x, x, x, mask, n_heads=N_HEADS)
    out = jax.block_until_ready(out)
    ref = mha_reference(params, x, x, x, mask, n_heads=N_HEADS)
    assert out.shape == (B, L, HID)
    assert jnp.allclose(out, ref, atol=2e-2, rtol=2e-2), "self-attn mismatch"

    # --- check 2: cross-attention (key is value), no mask (fused KV path) ----
    Lk = 16
    qx = jax.random.normal(kq, (B, L, HID), jnp.float32)
    qx = qx.astype(jnp.bfloat16).astype(jnp.float32)
    kv = jax.random.normal(kkv, (B, Lk, HID), jnp.float32)
    kv = kv.astype(jnp.bfloat16).astype(jnp.float32)

    out2 = mha_forward(params, qx, kv, kv, None, n_heads=N_HEADS)
    out2 = jax.block_until_ready(out2)
    ref2 = mha_reference(params, qx, kv, kv, None, n_heads=N_HEADS)
    assert out2.shape == (B, L, HID)
    assert jnp.allclose(out2, ref2, atol=2e-2, rtol=2e-2), "cross-attn mismatch"

    print("KERNEL_OK")
</pallas_src>

<mosaic_0001>
module attributes {stable_mosaic.version = 11 : i64} {
  func.func @_linear_kernel(%arg0: i32, %arg1: i32, %arg2: i32, %arg3: memref<16x128xbf16, #tpu.memory_space<vmem>>, %arg4: memref<128x128xbf16, #tpu.memory_space<vmem>>, %arg5: memref<1x128xf32, #tpu.memory_space<vmem>>, %arg6: memref<16x128xbf16, #tpu.memory_space<vmem>>, %arg7: memref<16x128xf32, #tpu.memory_space<vmem>>) attributes {dimension_semantics = [#tpu.dimension_semantics<parallel>, #tpu.dimension_semantics<parallel>, #tpu.dimension_semantics<arbitrary>], iteration_bounds = array<i64: 1, 1, 1>, scalar_prefetch = 0 : i64, scratch_operands = 1 : i64, tpu.core_type = #tpu.core_type<tc>, window_params = [{transform_indices = @transform_0, window_bounds = array<i64: 16, 128>}, {transform_indices = @transform_1, window_bounds = array<i64: 128, 128>}, {transform_indices = @transform_2, window_bounds = array<i64: 1, 128>}, {transform_indices = @transform_3, window_bounds = array<i64: 16, 128>}]} {
    %c0_i32 = arith.constant 0 : i32
    %0 = arith.cmpi eq, %arg2, %c0_i32 : i32
    %1 = arith.extui %0 : i1 to i32
    %c0_i32_0 = arith.constant 0 : i32
    %2 = arith.cmpi ne, %1, %c0_i32_0 : i32
    scf.if %2 {
      %cst_10 = arith.constant 0.000000e+00 : f32
      %12 = vector.broadcast %cst_10 : f32 to vector<16x128xf32>
      %c0_11 = arith.constant 0 : index
      %c0_12 = arith.constant 0 : index
      %13 = vector.load %arg7[%c0_11, %c0_12] : memref<16x128xf32, #tpu.memory_space<vmem>>, vector<16x128xf32>
      tpu.vector_store %arg7[%c0_11, %c0_12], %12 {strides = array<i32>} : memref<16x128xf32, #tpu.memory_space<vmem>>, vector<16x128xf32>,
    } else {
    }
    %c0 = arith.constant 0 : index
    %c0_1 = arith.constant 0 : index
    %3 = vector.load %arg7[%c0, %c0_1] : memref<16x128xf32, #tpu.memory_space<vmem>>, vector<16x128xf32>
    %c0_2 = arith.constant 0 : index
    %c0_3 = arith.constant 0 : index
    %4 = vector.load %arg3[%c0_2, %c0_3] : memref<16x128xbf16, #tpu.memory_space<vmem>>, vector<16x128xbf16>
    %c0_4 = arith.constant 0 : index
    %c0_5 = arith.constant 0 : index
    %5 = vector.load %arg4[%c0_4, %c0_5] : memref<128x128xbf16, #tpu.memory_space<vmem>>, vector<128x128xbf16>
    %cst = arith.constant dense<0.000000e+00> : vector<16x128xf32>
    %6 = tpu.matmul %4, %5, %cst {dimension_numbers = #tpu.dot_dimension_numbers<[1], [0], [0], [1], [0, 0, 1, 1], [], []>} : vector<16x128xbf16>, vector<128x128xbf16>, vector<16x128xf32> -> vector<16x128xf32>
    %7 = arith.addf %3, %6 : vector<16x128xf32>
    %c0_6 = arith.constant 0 : index
    %c0_7 = arith.constant 0 : index
    %8 = vector.load %arg7[%c0_6, %c0_7] : memref<16x128xf32, #tpu.memory_space<vmem>>, vector<16x128xf32>
    tpu.vector_store %arg7[%c0_6, %c0_7], %7 {strides = array<i32>} : memref<16x128xf32, #tpu.memory_space<vmem>>, vector<16x128xf32>,
    %c0_i32_8 = arith.constant 0 : i32
    %9 = arith.cmpi eq, %arg2, %c0_i32_8 : i32
    %10 = arith.extui %9 : i1 to i32
    %c0_i32_9 = arith.constant 0 : i32
    %11 = arith.cmpi ne, %10, %c0_i32_9 : i32
    scf.if %11 {
      %c0_10 = arith.constant 0 : index
      %c0_11 = arith.constant 0 : index
      %12 = vector.load %arg7[%c0_10, %c0_11] : memref<16x128xf32, #tpu.memory_space<vmem>>, vector<16x128xf32>
      %c0_12 = arith.constant 0 : index
      %c0_13 = arith.constant 0 : index
      %13 = vector.load %arg5[%c0_12, %c0_13] : memref<1x128xf32, #tpu.memory_space<vmem>>, vector<1x128xf32>
      %14 = vector.broadcast %13 : vector<1x128xf32> to vector<16x128xf32>
      %15 = arith.addf %12, %14 : vector<16x128xf32>
      %16 = arith.truncf %15 : vector<16x128xf32> to vector<16x128xbf16>
      %c0_14 = arith.constant 0 : index
      %c0_15 = arith.constant 0 : index
      %17 = vector.load %arg6[%c0_14, %c0_15] : memref<16x128xbf16, #tpu.memory_space<vmem>>, vector<16x128xbf16>
      tpu.vector_store %arg6[%c0_14, %c0_15], %16 {strides = array<i32>} : memref<16x128xbf16, #tpu.memory_space<vmem>>, vector<16x128xbf16>,
    } else {
    }
    return
  }
  func.func @transform_0(%arg0: i32, %arg1: i32, %arg2: i32) -> (i32, i32) {
    %c0_i32 = arith.constant 0 : i32
    return %arg0, %arg2 : i32, i32
  }
  func.func @transform_1(%arg0: i32, %arg1: i32, %arg2: i32) -> (i32, i32) {
    %c0_i32 = arith.constant 0 : i32
    return %arg2, %arg1 : i32, i32
  }
  func.func @transform_2(%arg0: i32, %arg1: i32, %arg2: i32) -> (i32, i32) {
    %c0_i32 = arith.constant 0 : i32
    %c0_i32_0 = arith.constant 0 : i32
    return %c0_i32, %arg1 : i32, i32
  }
  func.func @transform_3(%arg0: i32, %arg1: i32, %arg2: i32) -> (i32, i32) {
    %c0_i32 = arith.constant 0 : i32
    return %arg0, %arg1 : i32, i32
  }
}

</mosaic_0001>

<llo_original>
// kernel: tpu_custom_call.1
$region0: #{tpu_custom_call.1}
  #allocation0 [shape = 'u32[]', space=smem, size = 0x4, offset = 0x4, fixed_abs, tag = 'smem constant byte address 0x4 - core index']
  #allocation1 [shape = 'u32[144,128]{1,0:T(1,128)}', space=vmem, size = 0x12000, scoped, tag = 'internal scratch']
  #allocation2 [shape = 'f32[16,128]{1,0:T(8,128)}', space=vmem, size = 0x2000, scoped, tag = 'scratch operand']
  %s0 = inlined_call_operand.hbm [shape: bf16[16,128], index: 0, kind: input, shape index: {}]
  %s1 = inlined_call_operand.hbm [shape: bf16[128,128], index: 1, kind: input, shape index: {}]
  %s2 = inlined_call_operand.vmem [shape: f32[1,128], index: 2, kind: input, shape index: {}]
  %s3 = inlined_call_operand.hbm [shape: bf16[16,128], index: 3, kind: output, shape index: {}]
  %s4 = sld [smem:[#allocation0]]
  $region38: #{tpu_custom_call.1} parent=0
    _
  %s6 = ssub.s32 1, %s4
  %s7 = scalar_select 0, %s6, %s4
  $region1: #{tpu_custom_call.1} parent=0
    #allocation3 [shape = 'u8[4096]{0}', space=vmem, size = 0x1000, scoped, tag = 'input window, operand 0, single buffered']
    #allocation4 [shape = 's32[1]{0}', space=sflag, size = 0x4, scoped, tag = 'scoped memory for tpu_custom_call.1']
    #allocation5 [shape = 's32[1]{0}', space=sflag, size = 0x4, scoped, tag = 'scoped memory for tpu_custom_call.1']
    #allocation6 [shape = 'u8[32768]{0}', space=vmem, size = 0x8000, scoped, tag = 'input window, operand 1, single buffered']
    #allocation7 [shape = 's32[1]{0}', space=sflag, size = 0x4, scoped, tag = 'scoped memory for tpu_custom_call.1']
    #allocation8 [shape = 'u8[4096]{0}', space=vmem, size = 0x1000, scoped, tag = 'output window, operand 0, single buffered']
    %8 = vsyncpa [#allocation4], 0
    %9 = vsyncpa [#allocation7], 0
    %10 = vsyncpa [#allocation5], 0
    // Predicated region
    $region2: #{tpu_custom_call.1} parent=1 // pred_check
      _
    $region3: #{tpu_custom_call.1} parent=1 // pred_check_branch
      %12 = sbr.rel (0) target = $region5
    $region4: #{tpu_custom_call.1} parent=1 // pred_region
      %s14 = ssub.s32 128, 128
      %15 = vsyncadd [#allocation4], %s14
      %s16 = sshll.u32 [#allocation3], 4
      %s17 = int_to_ptr.vmem [resolvable:$true] %s16
      %22 = dma.hbm_to_vmem [thread:$0]  %s0, 128, %s17, [#allocation4], 64, 64, 4
    $region5: #{tpu_custom_call.1} parent=1 // pred_fallthru
      _
    // Predicated region
    $region6: #{tpu_custom_call.1} parent=1 // pred_check
      _
    $region7: #{tpu_custom_call.1} parent=1 // pred_check_branch
      %24 = sbr.rel (0) target = $region9
    $region8: #{tpu_custom_call.1} parent=1 // pred_region
      %s26 = ssub.s32 1024, 1024
      %27 = vsyncadd [#allocation7], %s26
      %s28 = sshll.u32 [#allocation6], 4
      %s29 = int_to_ptr.vmem [resolvable:$true] %s28
      %34 = dma.hbm_to_vmem [thread:$0]  %s1, 1024, %s29, [#allocation7], 64, 64, 4
    $region9: #{tpu_custom_call.1} parent=1 // pred_fallthru
      _
    // Predicated region
    $region10: #{tpu_custom_call.1} parent=1 // pred_check
      _
    $region11: #{tpu_custom_call.1} parent=1 // pred_check_branch
      %36 = sbr.rel (0) target = $region13
    $region12: #{tpu_custom_call.1} parent=1 // pred_region
      _
    $region13: #{tpu_custom_call.1} parent=1 // pred_fallthru
      _
    // Predicated region
    $region14: #{tpu_custom_call.1} parent=1 // pred_check
      _
    $region15: #{tpu_custom_call.1} parent=1 // pred_check_branch
      %38 = sbr.rel (0) target = $region17
    $region16: #{tpu_custom_call.1} parent=1 // pred_region
      %39 = dma.done [#allocation4], 128
    $region17: #{tpu_custom_call.1} parent=1 // pred_fallthru
      _
    // Predicated region
    $region18: #{tpu_custom_call.1} parent=1 // pred_check
      _
    $region19: #{tpu_custom_call.1} parent=1 // pred_check_branch
      %41 = sbr.rel (0) target = $region21
    $region20: #{tpu_custom_call.1} parent=1 // pred_region
      %42 = dma.done [#allocation7], 1024
    $region21: #{tpu_custom_call.1} parent=1 // pred_fallthru
      _
    %p44 = scmp.eq.s32.totalorder 0, 0
    // Predicated region
    $region22: #{tpu_custom_call.1} parent=1 // pred_check
      %p45 = pneg %p44
    $region23: #{tpu_custom_call.1} parent=1 // pred_check_branch
      %47 = sbr.rel (%p45) target = $region25
    $region24: #{tpu_custom_call.1} parent=1 // pred_region
      %48 = vst [vmem:[#allocation2] sm:$0xff] 0.0
      %49 = vst [vmem:[#allocation2 + $0x8] sm:$0xff] 0.0
    $region25: #{tpu_custom_call.1} parent=1 // pred_fallthru
      _
    %v50 = vld [vmem:[#allocation2] sm:$0xff]
    %v51 = vld [vmem:[#allocation2 + $0x8] sm:$0xff]
    %v52 = vld [vmem:[#allocation3] sm:$0xf]
    %v53 = vld [vmem:[#allocation3 + $0x4] sm:$0xf]
    %v54 = vld [vmem:[#allocation6] sm:$0xf]
    %v55 = vld [vmem:[#allocation6 + $0x4] sm:$0xf]
    %v56 = vld [vmem:[#allocation6 + $0x8] sm:$0xf]
    %v57 = vld [vmem:[#allocation6 + $0xc] sm:$0xf]
    %v58 = vld [vmem:[#allocation6 + $0x10] sm:$0xf]
    %v59 = vld [vmem:[#allocation6 + $0x14] sm:$0xf]
    %v60 = vld [vmem:[#allocation6 + $0x18] sm:$0xf]
    %v61 = vld [vmem:[#allocation6 + $0x1c] sm:$0xf]
    %v62 = vld [vmem:[#allocation6 + $0x20] sm:$0xf]
    %v63 = vld [vmem:[#allocation6 + $0x24] sm:$0xf]
    %v64 = vld [vmem:[#allocation6 + $0x28] sm:$0xf]
    %v65 = vld [vmem:[#allocation6 + $0x2c] sm:$0xf]
    %v66 = vld [vmem:[#allocation6 + $0x30] sm:$0xf]
    %v67 = vld [vmem:[#allocation6 + $0x34] sm:$0xf]
    %v68 = vld [vmem:[#allocation6 + $0x38] sm:$0xf]
    %v69 = vld [vmem:[#allocation6 + $0x3c] sm:$0xf]
    %v72 = vunpack.c.l.b16 %v52
    %v73 = vunpack.c.l.b16 %v53
    %v74 = vpack.c.b16 %v73, %v72
    %v92 = vunpack.c.l.b16 %v54
    %v93 = vunpack.c.l.b16 %v55
    %v94 = vunpack.c.l.b16 %v56
    %v95 = vunpack.c.l.b16 %v57
    %v96 = vunpack.c.l.b16 %v58
    %v97 = vunpack.c.l.b16 %v59
    %v98 = vunpack.c.l.b16 %v60
    %v99 = vunpack.c.l.b16 %v61
    %v100 = vunpack.c.l.b16 %v62
    %v101 = vunpack.c.l.b16 %v63
    %v102 = vunpack.c.l.b16 %v64
    %v103 = vunpack.c.l.b16 %v65
    %v104 = vunpack.c.l.b16 %v66
    %v105 = vunpack.c.l.b16 %v67
    %v106 = vunpack.c.l.b16 %v68
    %v107 = vunpack.c.l.b16 %v69
    %v108 = vpack.c.b16 %v93, %v92
    %v109 = vpack.c.b16 %v95, %v94
    %v110 = vpack.c.b16 %v97, %v96
    %v111 = vpack.c.b16 %v99, %v98
    %v112 = vpack.c.b16 %v101, %v100
    %v113 = vpack.c.b16 %v103, %v102
    %v114 = vpack.c.b16 %v105, %v104
    %v115 = vpack.c.b16 %v107, %v106
    %124 = vmatprep.subr.bf16.mxu0 0
    %125 = vmatpush1.bf16.msra.mxu0 %v115
    %126 = vmatprep.subr.bf16.mxu0 0
    %127 = vmatpush1.bf16.msra.mxu0 %v114
    %128 = vmatprep.subr.bf16.mxu0 0
    %129 = vmatpush1.bf16.msra.mxu0 %v113
    %130 = vmatprep.subr.bf16.mxu0 0
    %131 = vmatpush1.bf16.msra.mxu0 %v112
    %132 = vmatprep.subr.bf16.mxu0 0
    %133 = vmatpush1.bf16.msra.mxu0 %v111
    %134 = vmatprep.subr.bf16.mxu0 0
    %135 = vmatpush1.bf16.msra.mxu0 %v110
    %136 = vmatprep.subr.bf16.mxu0 0
    %137 = vmatpush1.bf16.msra.mxu0 %v109
    %138 = vmatprep.subr.bf16.mxu0 0
    %139 = vmatpush1.bf16.msra.mxu0 %v108
    %140 = vmatprep.subr.bf16.mxu0 0
    %141 = vmatpush2.bf16.msra.mxu0 0
    %142 = vmatprep.subr.bf16.mxu0 0
    %143 = vmatpush2.bf16.msra.mxu0 0
    %144 = vmatprep.subr.bf16.mxu0 0
    %145 = vmatpush2.bf16.msra.mxu0 0
    %146 = vmatprep.subr.bf16.mxu0 0
    %147 = vmatpush2.bf16.msra.mxu0 0
    %148 = vmatprep.subr.bf16.mxu0 0
    %149 = vmatpush2.bf16.msra.mxu0 0
    %150 = vmatprep.subr.bf16.mxu0 0
    %151 = vmatpush2.bf16.msra.mxu0 0
    %152 = vmatprep.subr.bf16.mxu0 0
    %153 = vmatpush2.bf16.msra.mxu0 0
    %154 = vmatprep.subr.bf16.mxu0 0
    %155 = vmatpush2.bf16.msra.mxu0 0
    %156 = vmatprep.mubr.bf16.mxu0 0
    %157 = vmatmul.mubr.bf16.gmra.mxu0 %v74
    %v158 = vpop.f32.mrf.mxu0
    %v159 = vadd.f32 0.0, %v158
    %v160 = vpop.f32.mrf.mxu0
    %v161 = vpop.f32.mrf.mxu0
    %v162 = vadd.f32 0.0, %v161
    %v163 = vpop.f32.mrf.mxu0
    %164 = vdwg.mxu0
    %v165 = vadd.f32 %v50, %v159
    %v166 = vadd.f32 %v51, %v162
    %167 = vst [vmem:[#allocation2] sm:$0xff] %v165
    %168 = vst [vmem:[#allocation2 + $0x8] sm:$0xff] %v166
    // Predicated region
    $region26: #{tpu_custom_call.1} parent=1 // pred_check
      %p169 = pneg %p44
    $region27: #{tpu_custom_call.1} parent=1 // pred_check_branch
      %171 = sbr.rel (%p169) target = $region29
    $region28: #{tpu_custom_call.1} parent=1 // pred_region
      %v172 = vld [vmem:[#allocation2] sm:$0xff]
      %v173 = vld [vmem:[#allocation2 + $0x8] sm:$0xff]
      %v174 = vld [vmem:[%s2] sm:$0x1]
      %v176 = vlaneseq
      %v177 = vshrl.u32 %v176, 7
      %v178 = vsub.s32 0, %v177
      %v179 = vrot.slane %v174, %v178
      %v181 = vadd.f32 %v172, %v179
      %v182 = vadd.f32 %v173, %v179
      %v183 = vpack.c.bf16 %v182, %v181
      %v185 = vunpack.c.l.b16 %v183
      %v186 = vunpack.c.h.b16 %v183
      %v187 = vpack.c.b16 %v185, %v185
      %v188 = vpack.c.b16 %v186, %v186
      %191 = vst [vmem:[#allocation8] sm:$0xf] %v187
      %192 = vst [vmem:[#allocation8 + $0x4] sm:$0xf] %v188
    $region29: #{tpu_custom_call.1} parent=1 // pred_fallthru
      _
    // Predicated region
    $region30: #{tpu_custom_call.1} parent=1 // pred_check
      _
    $region31: #{tpu_custom_call.1} parent=1 // pred_check_branch
      %194 = sbr.rel (0) target = $region33
    $region32: #{tpu_custom_call.1} parent=1 // pred_region
      %s196 = ssub.s32 128, 128
      %197 = vsyncadd [#allocation5], %s196
      %s198 = sshll.u32 [#allocation8], 4
      %s199 = int_to_ptr.vmem [resolvable:$true] %s198
      %204 = dma.vmem_to_hbm [thread:$0]  %s199, 128, %s3, [#allocation5], 64, 64, 4
    $region33: #{tpu_custom_call.1} parent=1 // pred_fallthru
      _
    // Predicated region
    $region34: #{tpu_custom_call.1} parent=1 // pred_check
      _
    $region35: #{tpu_custom_call.1} parent=1 // pred_check_branch
      %206 = sbr.rel (0) target = $region37
    $region36: #{tpu_custom_call.1} parent=1 // pred_region
      %207 = dma.done [#allocation5], 128
    $region37: #{tpu_custom_call.1} parent=1 // pred_fallthru
      _
    %208 = vsyncpa [#allocation4], 1
    %209 = vsyncpa [#allocation7], 1
    %210 = vsyncpa [#allocation5], 1

</llo_original>
